<compile_context>
chip_gen: v6e
topology: v6e:2x2x1
jax: 0.10.0
libtpu: 0.0.40
codegen_flags: <defaults>
</compile_context>

<pallas_src>
import math

import numpy as np
import jax
import jax.numpy as jnp
from jax import lax
from jax.experimental import pallas as pl
from jax.experimental.pallas import tpu as pltpu

# ---------------- deterministic "cfg" (synthetic, small) ----------------
SAMPLE_RATE = 4000
N_FFT = 64
WIN_LENGTH = N_FFT
HOP_LENGTH = N_FFT // 2          # torchaudio default: win_length // 2
N_MELS = 16
F_MIN = 0.0
F_MAX = SAMPLE_RATE / 2.0
POWER = 2.0                      # power spectrogram (torchaudio default)
TOP_DB = 80.0                    # cfg.top_db
AMIN = 1e-10                     # AmplitudeToDB default
DB_MULTIPLIER = math.log10(max(AMIN, 1.0))   # ref_value = 1.0 -> 0.0
NORM_M = -20.0                   # cfg.norm_ms[0]
NORM_S = 20.0                    # cfg.norm_ms[1]

N_FREQ = N_FFT // 2 + 1
N_FREQ2 = 2 * N_FREQ             # stacked (cos | sin) frequency axis
LOG10_MUL = 10.0 / math.log(10.0)
DB_OFFSET = -10.0 * DB_MULTIPLIER        # == 0.0 for ref_value 1.0
INV_NORM_S = 1.0 / NORM_S


# ---------------- constant matrices (window-folded DFT + mel filterbank) ----------------
def _hann_window(n):
    # torch.hann_window(periodic=True)
    k = np.arange(n, dtype=np.float64)
    return 0.5 * (1.0 - np.cos(2.0 * np.pi * k / n))


def _dft_matrices(n_fft):
    # real-input DFT as matmul: re = x @ C, im = x @ S   (window folded in)
    n = np.arange(n_fft, dtype=np.float64)[:, None]            # (n_fft, 1)
    k = np.arange(N_FREQ, dtype=np.float64)[None, :]            # (1, n_freq)
    ang = 2.0 * np.pi * n * k / n_fft
    w = _hann_window(n_fft)[:, None]
    cosw = (w * np.cos(ang)).astype(np.float32)                 # (n_fft, n_freq)
    sinw = (-w * np.sin(ang)).astype(np.float32)                # (n_fft, n_freq)
    return cosw, sinw


def _mel_filterbank(n_freqs, f_min, f_max, n_mels, sample_rate):
    # torchaudio melscale_fbanks, mel_scale="htk", norm=None
    def hz_to_mel(f):
        return 2595.0 * np.log10(1.0 + f / 700.0)

    def mel_to_hz(m):
        return 700.0 * (10.0 ** (m / 2595.0) - 1.0)

    all_freqs = np.linspace(0.0, sample_rate // 2, n_freqs)
    m_pts = np.linspace(hz_to_mel(f_min), hz_to_mel(f_max), n_mels + 2)
    f_pts = mel_to_hz(m_pts)
    f_diff = f_pts[1:] - f_pts[:-1]                              # (n_mels+1,)
    slopes = f_pts[None, :] - all_freqs[:, None]                 # (n_freqs, n_mels+2)
    down = -slopes[:, :-2] / f_diff[:-1]
    up = slopes[:, 2:] / f_diff[1:]
    fb = np.maximum(0.0, np.minimum(down, up))                   # (n_freqs, n_mels)
    return fb.astype(np.float32)


# ---------------- Pallas kernel ----------------
def _make_kernel(batches_per_block, frames_pad, n_frames):
    def kernel(inv_std2_ref, frames_ref, w_ref, fbt_ref, out_ref):
        # frames_ref: (batches_per_block*frames_pad, n_fft)   -- batch merged into M
        # w_ref:      (n_fft, 2*n_freq)   fused [cos | sin] windowed DFT
        # fbt_ref:    (n_mels, 2*n_freq)  stacked mel filterbank, transposed
        # out_ref:    (batches_per_block, n_mels, n_frames)
        y = jnp.dot(frames_ref[...], w_ref[...],
                    preferred_element_type=jnp.float32)          # (M, 2*n_freq)  MXU
        p = y * y                                                # |re|^2, |im|^2 stacked
        # mel filterbank as A @ B^T -> result already in (n_mels, frames) layout
        mel_t = jnp.einsum('mf,nf->mn', fbt_ref[...], p,
                           preferred_element_type=jnp.float32)   # (n_mels, M)    MXU

        base = pl.program_id(0) * batches_per_block
        for b in range(batches_per_block):                       # static, small
            # fold 1/std into the power domain (exact parity: applied before amin clamp)
            scale2 = inv_std2_ref[base + b]
            mel_b = mel_t[:, b * frames_pad:(b + 1) * frames_pad] * scale2   # (n_mels, fpad)
            db = LOG10_MUL * jnp.log(jnp.maximum(mel_b, AMIN)) + DB_OFFSET
            # per-spectrogram (per batch item) top_db clamp; mask padded frame columns
            col = lax.broadcasted_iota(jnp.int32, db.shape, 1)
            db_max = jnp.max(jnp.where(col < n_frames, db, -jnp.inf))
            db = jnp.maximum(db, db_max - TOP_DB)
            out_ref[b] = ((db - NORM_M) * INV_NORM_S)[:, :n_frames]
    return kernel


def preprocessor_forward(x):
    """x: (B, T) float32 waveform -> (B, n_mels, n_frames) float32."""
    B, T = x.shape
    x = x.astype(jnp.float32)

    # x / std(x, dim=1) with unbiased std; folded as 1/std^2 on the power spectrum.
    var = jnp.var(x, axis=1, ddof=1)                             # (B,)
    inv_std2 = (1.0 / var).astype(jnp.float32)                   # scalar-prefetch arg

    # center=True, pad_mode="reflect" framing (glue)
    pad = N_FFT // 2
    xp = jnp.pad(x, ((0, 0), (pad, pad)), mode="reflect")        # (B, T + n_fft)
    n_frames = T // HOP_LENGTH + 1
    idx = (np.arange(n_frames)[:, None] * HOP_LENGTH
           + np.arange(N_FFT)[None, :])                          # (n_frames, n_fft)
    frames = xp[:, idx]                                          # (B, n_frames, n_fft)
    # TODO(synk): if HBM-bound at large T, feed non-overlapping hop-sized rows and split
    # W into top/bottom halves instead of materializing 2x-redundant overlapping frames.

    # pad frames to a multiple of 8 so per-batch rows stay sublane-aligned after merging B into M
    frames_pad = ((n_frames + 7) // 8) * 8
    if frames_pad != n_frames:
        frames = jnp.pad(frames, ((0, 0), (0, frames_pad - n_frames), (0, 0)))
    frames2d = frames.reshape(B * frames_pad, N_FFT)             # (B*fpad, n_fft)

    # fused constants
    cosw, sinw = _dft_matrices(N_FFT)
    w = jnp.asarray(np.concatenate([cosw, sinw], axis=1))        # (n_fft, 2*n_freq)
    fb = _mel_filterbank(N_FREQ, F_MIN, F_MAX, N_MELS, SAMPLE_RATE)
    fb2_t = jnp.asarray(np.concatenate([fb, fb], axis=0).T)      # (n_mels, 2*n_freq)

    # grid: >=2 "parallel" blocks when B allows (v7x has 2 TCs), otherwise a single big block.
    # Batch items inside a block are merged into the matmul M dim to amortize per-step overhead.
    num_blocks = 2 if (B >= 2 and B % 2 == 0) else 1
    vmem_cap = 8 * 1024 * 1024   # keep the double-buffered frames block well under scoped VMEM
    while (B // num_blocks) * frames_pad * N_FFT * 4 * 2 > vmem_cap and B % (num_blocks * 2) == 0:
        num_blocks *= 2
    bpb = B // num_blocks
    m_block = bpb * frames_pad

    flops = (2 * B * frames_pad * N_FFT * N_FREQ2        # frames @ W
             + 2 * B * frames_pad * N_FREQ2 * N_MELS     # mel filterbank
             + 4 * B * frames_pad * N_FREQ2)             # square + misc elementwise
    bytes_accessed = (B * frames_pad * N_FFT * 4 + N_FFT * N_FREQ2 * 4
                      + N_MELS * N_FREQ2 * 4 + B * 4
                      + B * N_MELS * n_frames * 4)

    out = pl.pallas_call(
        _make_kernel(bpb, frames_pad, n_frames),
        out_shape=jax.ShapeDtypeStruct((B, N_MELS, n_frames), jnp.float32),
        grid_spec=pltpu.PrefetchScalarGridSpec(
            num_scalar_prefetch=1,                               # inv_std2 -> SMEM
            grid=(num_blocks,),
            in_specs=[
                pl.BlockSpec((m_block, N_FFT), lambda i, s: (i, 0)),
                pl.BlockSpec((N_FFT, N_FREQ2), lambda i, s: (0, 0)),
                pl.BlockSpec((N_MELS, N_FREQ2), lambda i, s: (0, 0)),
            ],
            out_specs=pl.BlockSpec((bpb, N_MELS, n_frames), lambda i, s: (i, 0, 0)),
        ),
        compiler_params=pltpu.CompilerParams(
            dimension_semantics=("parallel",)),
        cost_estimate=pl.CostEstimate(
            flops=int(flops),
            transcendentals=int(B * frames_pad * N_MELS),
            bytes_accessed=int(bytes_accessed)),
    )(inv_std2, frames2d, w, fb2_t)

    return out                                                   # (B, n_mels, n_frames)


# ---------------- pure-JAX reference for sanity checking ----------------
def _reference(x):
    x = x.astype(jnp.float32)
    std = jnp.std(x, axis=1, ddof=1, keepdims=True)
    xn = x / std
    pad = N_FFT // 2
    xp = jnp.pad(xn, ((0, 0), (pad, pad)), mode="reflect")
    n_frames = x.shape[1] // HOP_LENGTH + 1
    idx = (np.arange(n_frames)[:, None] * HOP_LENGTH + np.arange(N_FFT)[None, :])
    frames = xp[:, idx]
    cosw, sinw = _dft_matrices(N_FFT)
    fb = _mel_filterbank(N_FREQ, F_MIN, F_MAX, N_MELS, SAMPLE_RATE)
    re = frames @ jnp.asarray(cosw)
    im = frames @ jnp.asarray(sinw)
    mel = (re * re + im * im) @ jnp.asarray(fb)
    db = 10.0 * jnp.log10(jnp.maximum(mel, AMIN)) - 10.0 * DB_MULTIPLIER
    db = jnp.maximum(db, jnp.max(db, axis=(1, 2), keepdims=True) - TOP_DB)
    db = (db - NORM_M) / NORM_S
    return jnp.transpose(db, (0, 2, 1))


if __name__ == "__main__":
    key = jax.random.PRNGKey(0)
    B, T = 2, 256
    x = jax.random.normal(key, (B, T), dtype=jnp.float32)

    out = preprocessor_forward(x)
    jax.block_until_ready(out)

    ref = _reference(x)
    np.testing.assert_allclose(np.asarray(out), np.asarray(ref), rtol=1e-3, atol=1e-3)

    print("KERNEL_OK")
</pallas_src>

<mosaic_0001>
module attributes {stable_mosaic.version = 11 : i64} {
  func.func @kernel(%arg0: i32, %arg1: memref<2xf32, #tpu.memory_space<smem>>, %arg2: memref<16x64xf32, #tpu.memory_space<vmem>>, %arg3: memref<64x66xf32, #tpu.memory_space<vmem>>, %arg4: memref<16x66xf32, #tpu.memory_space<vmem>>, %arg5: memref<1x16x9xf32, #tpu.memory_space<vmem>>) attributes {dimension_semantics = [#tpu.dimension_semantics<parallel>], iteration_bounds = array<i64: 2>, scalar_prefetch = 1 : i64, scratch_operands = 0 : i64, tpu.core_type = #tpu.core_type<tc>, window_params = [{transform_indices = @transform_0, window_bounds = array<i64: 16, 64>}, {pipeline_mode = #tpu.pipeline_mode<synchronous>, transform_indices = @transform_1, window_bounds = array<i64: 64, 66>}, {pipeline_mode = #tpu.pipeline_mode<synchronous>, transform_indices = @transform_2, window_bounds = array<i64: 16, 66>}, {transform_indices = @transform_3, window_bounds = array<i64: 1, 16, 9>}]} {
    %c0 = arith.constant 0 : index
    %c0_0 = arith.constant 0 : index
    %0 = vector.load %arg2[%c0, %c0_0] : memref<16x64xf32, #tpu.memory_space<vmem>>, vector<16x64xf32>
    %c0_1 = arith.constant 0 : index
    %c0_2 = arith.constant 0 : index
    %1 = vector.load %arg3[%c0_1, %c0_2] : memref<64x66xf32, #tpu.memory_space<vmem>>, vector<64x66xf32>
    %cst = arith.constant dense<0.000000e+00> : vector<16x66xf32>
    %2 = tpu.matmul %0, %1, %cst {dimension_numbers = #tpu.dot_dimension_numbers<[1], [0], [0], [1], [0, 0, 1, 1], [], []>} : vector<16x64xf32>, vector<64x66xf32>, vector<16x66xf32> -> vector<16x66xf32>
    %3 = arith.mulf %2, %2 : vector<16x66xf32>
    %c0_3 = arith.constant 0 : index
    %c0_4 = arith.constant 0 : index
    %4 = vector.load %arg4[%c0_3, %c0_4] : memref<16x66xf32, #tpu.memory_space<vmem>>, vector<16x66xf32>
    "tpu.trace_start"() <{level = 10 : i32, message = "mf,nf->mn"}> : () -> ()
    %cst_5 = arith.constant dense<0.000000e+00> : vector<16x16xf32>
    %5 = tpu.matmul %4, %3, %cst_5 {dimension_numbers = #tpu.dot_dimension_numbers<[1], [1], [0], [0], [0, 0, 1, 0], [], []>} : vector<16x66xf32>, vector<16x66xf32>, vector<16x16xf32> -> vector<16x16xf32>
    "tpu.trace_stop"() : () -> ()
    %c1_i32 = arith.constant 1 : i32
    %6 = arith.muli %arg0, %c1_i32 : i32
    %c0_i32 = arith.constant 0 : i32
    %7 = arith.addi %6, %c0_i32 : i32
    %8 = arith.index_cast %7 : i32 to index
    %9 = memref.load %arg1[%8] : memref<2xf32, #tpu.memory_space<smem>>
    %10 = vector.broadcast %9 : f32 to vector<16x16xf32>
    %11 = arith.mulf %5, %10 : vector<16x16xf32>
    %cst_6 = arith.constant 1.000000e-10 : f32
    %12 = vector.broadcast %cst_6 : f32 to vector<16x16xf32>
    %13 = arith.maximumf %11, %12 : vector<16x16xf32>
    %14 = math.log %13 : vector<16x16xf32>
    %cst_7 = arith.constant 4.34294462 : f32
    %15 = vector.broadcast %cst_7 : f32 to vector<16x16xf32>
    %16 = arith.mulf %15, %14 : vector<16x16xf32>
    %cst_8 = arith.constant -0.000000e+00 : f32
    %17 = vector.broadcast %cst_8 : f32 to vector<16x16xf32>
    %18 = arith.addf %16, %17 : vector<16x16xf32>
    %19 = tpu.iota {dimensions = array<i32: 1>} : vector<16x16xi32>
    %c9_i32 = arith.constant 9 : i32
    %20 = vector.broadcast %c9_i32 : i32 to vector<16x16xi32>
    %21 = arith.cmpi slt, %19, %20 : vector<16x16xi32>
    %cst_9 = arith.constant 0xFF800000 : f32
    %22 = vector.broadcast %cst_9 : f32 to vector<16x16xf32>
    %23 = arith.select %21, %18, %22 : vector<16x16xi1>, vector<16x16xf32>
    %24 = vector.shape_cast %23 : vector<16x16xf32> to vector<1x16x16xf32>
    %cst_10 = arith.constant dense<0xFF800000> : vector<1xf32>
    %25 = vector.multi_reduction <maximumf>, %24, %cst_10 [1, 2] : vector<1x16x16xf32> to vector<1xf32>
    %26 = vector.shape_cast %25 : vector<1xf32> to vector<1x1x1xf32>
    %27 = vector.extract %26[0, 0, 0] : f32 from vector<1x1x1xf32>
    %cst_11 = arith.constant 8.000000e+01 : f32
    %28 = arith.subf %27, %cst_11 : f32
    %29 = vector.broadcast %28 : f32 to vector<16x16xf32>
    %30 = arith.maximumf %18, %29 : vector<16x16xf32>
    %cst_12 = arith.constant -2.000000e+01 : f32
    %31 = vector.broadcast %cst_12 : f32 to vector<16x16xf32>
    %32 = arith.subf %30, %31 : vector<16x16xf32>
    %cst_13 = arith.constant 5.000000e-02 : f32
    %33 = vector.broadcast %cst_13 : f32 to vector<16x16xf32>
    %34 = arith.mulf %32, %33 : vector<16x16xf32>
    %35 = vector.extract_strided_slice %34 {offsets = [0, 0], sizes = [16, 9], strides = [1, 1]} : vector<16x16xf32> to vector<16x9xf32>
    %c0_14 = arith.constant 0 : index
    %c0_15 = arith.constant 0 : index
    %c0_16 = arith.constant 0 : index
    %36 = vector.load %arg5[%c0_14, %c0_15, %c0_16] : memref<1x16x9xf32, #tpu.memory_space<vmem>>, vector<1x16x9xf32>
    %37 = vector.shape_cast %36 : vector<1x16x9xf32> to vector<16x9xf32>
    %38 = vector.shape_cast %35 : vector<16x9xf32> to vector<1x16x9xf32>
    tpu.vector_store %arg5[%c0_14, %c0_15, %c0_16], %38 {strides = array<i32>} : memref<1x16x9xf32, #tpu.memory_space<vmem>>, vector<1x16x9xf32>,
    return
  }
  func.func @transform_0(%arg0: i32, %arg1: memref<2xf32, #tpu.memory_space<smem>>) -> (i32, i32) {
    %c0_i32 = arith.constant 0 : i32
    %c0_i32_0 = arith.constant 0 : i32
    return %arg0, %c0_i32 : i32, i32
  }
  func.func @transform_1(%arg0: i32, %arg1: memref<2xf32, #tpu.memory_space<smem>>) -> (i32, i32) {
    %c0_i32 = arith.constant 0 : i32
    %c0_i32_0 = arith.constant 0 : i32
    %c0_i32_1 = arith.constant 0 : i32
    return %c0_i32, %c0_i32_0 : i32, i32
  }
  func.func @transform_2(%arg0: i32, %arg1: memref<2xf32, #tpu.memory_space<smem>>) -> (i32, i32) {
    %c0_i32 = arith.constant 0 : i32
    %c0_i32_0 = arith.constant 0 : i32
    %c0_i32_1 = arith.constant 0 : i32
    return %c0_i32, %c0_i32_0 : i32, i32
  }
  func.func @transform_3(%arg0: i32, %arg1: memref<2xf32, #tpu.memory_space<smem>>) -> (i32, i32, i32) {
    %c0_i32 = arith.constant 0 : i32
    %c0_i32_0 = arith.constant 0 : i32
    %c0_i32_1 = arith.constant 0 : i32
    return %arg0, %c0_i32, %c0_i32_0 : i32, i32, i32
  }
}

</mosaic_0001>

<llo_original>
// kernel: tpu_custom_call.1
$region0: #{tpu_custom_call.1}
  #allocation0 [shape = 'u32[]', space=smem, size = 0x4, offset = 0x4, fixed_abs, tag = 'smem constant byte address 0x4 - core index']
  #allocation1 [shape = 'u32[144,128]{1,0:T(1,128)}', space=vmem, size = 0x12000, scoped, tag = 'internal scratch']
  #allocation2 [shape = 's32[1]{0}', space=sflag, size = 0x4, scoped, tag = 'scoped memory for tpu_custom_call.1']
  #allocation3 [shape = 'u8[512]{0}', space=smem, size = 0x200, scoped, tag = 'prefetched SMEM operand 0']
  %s0 = inlined_call_operand.hbm [shape: f32[2], index: 0, kind: input, shape index: {}]
  %s1 = inlined_call_operand.hbm [shape: f32[32,64], index: 1, kind: input, shape index: {}]
  %s2 = inlined_call_operand.hbm [shape: f32[64,66], index: 2, kind: input, shape index: {}]
  %s3 = inlined_call_operand.hbm [shape: f32[16,66], index: 3, kind: input, shape index: {}]
  %s4 = inlined_call_operand.vmem [shape: f32[2,16,9], index: 4, kind: output, shape index: {}]
  %s5 = sld [smem:[#allocation0]]
  $region57: #{tpu_custom_call.1} parent=0
    _
  %s7 = ssub.s32 1, %s5
  %s8 = scalar_select 0, %s7, %s5
  %10 = dma.hbm_to_smem %s0, 16, [#allocation3], [#allocation2]
  %11 = dma.done [#allocation2], 16
  %12 = sfence
  $region1: #{tpu_custom_call.1} parent=0
    #allocation4 [shape = 'u8[16384]{0}', space=vmem, size = 0x4000, scoped, tag = 'input window, operand 1']
    #allocation5 [shape = 's32[2]{0}', space=sflag, size = 0x8, scoped, tag = 'scoped memory for tpu_custom_call.1']
    #allocation6 [shape = 'u8[32768]{0}', space=vmem, size = 0x8000, scoped, tag = 'input window, operand 2, single buffered']
    #allocation7 [shape = 's32[1]{0}', space=sflag, size = 0x4, scoped, tag = 'scoped memory for tpu_custom_call.1']
    #allocation8 [shape = 'u8[8192]{0}', space=vmem, size = 0x2000, scoped, tag = 'input window, operand 3, single buffered']
    %13 = vsyncpa [#allocation5], 0
    %s14 = scalar_lea.sflag [#allocation5], 1
    %15 = vsyncpa %s14, 0
    %16 = vsyncpa [#allocation7], 0
    loop: start=0, step=1, limit=4
    $region2: #{tpu_custom_call.1} parent=1 // loop_pre_header
      _
    $region3: #{tpu_custom_call.1} parent=1 // loop_header
      %s18 = sphi 0, %s22
      %p19 = scmp.ge.s32.totalorder %s18, 4
      %s28 = sphi 0, %s30
      %s31 = sphi 0, %s28
      %s32 = sphi 0, %s31
      %s48 = sphi 0, %s32
      %s52 = sphi 0, %s52
      %s54 = sphi 0, %s52
      %s55 = sphi 0, %s54
      %s69 = sphi 0, %s55
      %s73 = sphi 0, %s73
      %s75 = sphi 0, %s73
      %s76 = sphi 0, %s75
      %s90 = sphi 0, %s76
      %s96 = sphi 0, %s98
      %s99 = sphi 0, %s96
      %s100 = sphi 0, %s99
      %s116 = sphi 0, %s100
    $region4: #{tpu_custom_call.1} parent=1 // loop_header_branch
      %21 = sbr.rel (%p19) target = $region8
    $region5: #{tpu_custom_call.1} parent=1 // loop_body
      %s23 = ssub.s32 %s18, 1
      %s24 = ssub.s32 %s18, 2
      %s25 = sadd.s32 %s18, 1
      %s26 = ssub.s32 %s18, %s25
      %p27 = scmp.eq.s32.totalorder %s26, 0
      %s29 = sadd.s32 %s28, 1
      %s30 = scalar_select %p27, %s28, %s29
      %p33 = pneg %p27
      %p34 = scmp.eq.s32.totalorder %s18, 1
      %p35 = por %p33, %p34
      %p36 = scmp.ne.s32.totalorder %s28, %s31
      %p37 = scmp.eq.s32.totalorder %s18, 0
      %p38 = por %p36, %p37
      %p39 = scmp.ne.s32.totalorder %s28, %s31
      %p40 = scmp.eq.s32.totalorder %s23, 1
      %p41 = por %p39, %p40
      %p42 = scmp.ne.s32.totalorder %s31, %s32
      %p43 = scmp.eq.s32.totalorder %s23, 0
      %p44 = por %p42, %p43
      %p45 = scmp.ne.s32.totalorder %s31, %s32
      %p46 = scmp.eq.s32.totalorder %s24, 1
      %p47 = por %p45, %p46
      %p49 = scmp.ne.s32.totalorder %s32, %s48
      %p50 = scmp.eq.s32.totalorder %s24, 0
      %p51 = por %p49, %p50
      %s53 = sadd.s32 %s52, 1
      %p56 = scmp.eq.s32.totalorder %s18, 1
      %p57 = scmp.ne.s32.totalorder %s52, %s54
      %p58 = scmp.eq.s32.totalorder %s18, 0
      %p59 = por %p57, %p58
      %p60 = scmp.ne.s32.totalorder %s52, %s54
      %p61 = scmp.eq.s32.totalorder %s23, 1
      %p62 = por %p60, %p61
      %p63 = scmp.ne.s32.totalorder %s54, %s55
      %p64 = scmp.eq.s32.totalorder %s23, 0
      %p65 = por %p63, %p64
      %p66 = scmp.ne.s32.totalorder %s54, %s55
      %p67 = scmp.eq.s32.totalorder %s24, 1
      %p68 = por %p66, %p67
      %p70 = scmp.ne.s32.totalorder %s55, %s69
      %p71 = scmp.eq.s32.totalorder %s24, 0
      %p72 = por %p70, %p71
      %s74 = sadd.s32 %s73, 1
      %p77 = scmp.eq.s32.totalorder %s18, 1
      %p78 = scmp.ne.s32.totalorder %s73, %s75
      %p79 = scmp.eq.s32.totalorder %s18, 0
      %p80 = por %p78, %p79
      %p81 = scmp.ne.s32.totalorder %s73, %s75
      %p82 = scmp.eq.s32.totalorder %s23, 1
      %p83 = por %p81, %p82
      %p84 = scmp.ne.s32.totalorder %s75, %s76
      %p85 = scmp.eq.s32.totalorder %s23, 0
      %p86 = por %p84, %p85
      %p87 = scmp.ne.s32.totalorder %s75, %s76
      %p88 = scmp.eq.s32.totalorder %s24, 1
      %p89 = por %p87, %p88
      %p91 = scmp.ne.s32.totalorder %s76, %s90
      %p92 = scmp.eq.s32.totalorder %s24, 0
      %p93 = por %p91, %p92
      %s94 = ssub.s32 %s18, %s25
      %p95 = scmp.eq.s32.totalorder %s94, 0
      %s97 = sadd.s32 %s96, 1
      %s98 = scalar_select %p95, %s96, %s97
      %p101 = pneg %p95
      %p102 = scmp.eq.s32.totalorder %s18, 1
      %p103 = por %p101, %p102
      %p104 = scmp.ne.s32.totalorder %s96, %s99
      %p105 = scmp.eq.s32.totalorder %s18, 0
      %p106 = por %p104, %p105
      %p107 = scmp.ne.s32.totalorder %s96, %s99
      %p108 = scmp.eq.s32.totalorder %s23, 1
      %p109 = por %p107, %p108
      %p110 = scmp.ne.s32.totalorder %s99, %s100
      %p111 = scmp.eq.s32.totalorder %s23, 0
      %p112 = por %p110, %p111
      %p113 = scmp.ne.s32.totalorder %s99, %s100
      %p114 = scmp.eq.s32.totalorder %s24, 1
      %p115 = por %p113, %p114
      %p117 = scmp.ne.s32.totalorder %s100, %s116
      %p118 = scmp.eq.s32.totalorder %s24, 0
      %p119 = por %p117, %p118
      %p120 = scmp.le.s32.totalorder 1, %s18
      %p121 = scmp.lt.s32.totalorder %s18, 3
      %p122 = pnand %p120, %p121
      %p123 = pneg %p122
      // Predicated region
      $region9: #{tpu_custom_call.1} parent=5 // pred_check
        _
      $region10: #{tpu_custom_call.1} parent=5 // pred_check_branch
        %125 = sbr.rel (%p122) target = $region12
      $region11: #{tpu_custom_call.1} parent=5 // pred_region
        %s126 = ssub.s32 %s18, 1
        // Predicated region
        $region13: #{tpu_custom_call.1} parent=11 // pred_check
          %p127 = pneg %p65
        $region14: #{tpu_custom_call.1} parent=11 // pred_check_branch
          %129 = sbr.rel (%p127) target = $region16
        $region15: #{tpu_custom_call.1} parent=11 // pred_region
          %s131 = ssub.s32 1024, 1024
          %132 = vsyncadd [#allocation7], %s131
          %s133 = sshll.u32 [#allocation6], 4
          %s134 = int_to_ptr.vmem [resolvable:$true] %s133
          %139 = dma.hbm_to_vmem [thread:$0]  %s2, 1024, %s134, [#allocation7], 128, 128, 8
        $region16: #{tpu_custom_call.1} parent=11 // pred_fallthru
          _
        // Predicated region
        $region17: #{tpu_custom_call.1} parent=11 // pred_check
          %p140 = pneg %p86
        $region18: #{tpu_custom_call.1} parent=11 // pred_check_branch
          %142 = sbr.rel (%p140) target = $region20
        $region19: #{tpu_custom_call.1} parent=11 // pred_region
          %s144 = ssub.s32 256, 256
          %145 = vsyncadd [#allocation7], %s144
          %s146 = sshll.u32 [#allocation8], 4
          %s147 = int_to_ptr.vmem [resolvable:$true] %s146
          %152 = dma.hbm_to_vmem [thread:$0]  %s3, 256, %s147, [#allocation7], 128, 128, 8
        $region20: #{tpu_custom_call.1} parent=11 // pred_fallthru
          _
      $region12: #{tpu_custom_call.1} parent=5 // pred_fallthru
        _
      %p153 = scmp.lt.s32.totalorder %s18, 2
      // Predicated region
      $region21: #{tpu_custom_call.1} parent=5 // pred_check
        %p154 = pneg %p153
      $region22: #{tpu_custom_call.1} parent=5 // pred_check_branch
        %156 = sbr.rel (%p154) target = $region24
      $region23: #{tpu_custom_call.1} parent=5 // pred_region
        // Predicated region
        $region25: #{tpu_custom_call.1} parent=23 // pred_check
          %p157 = pneg %p38
        $region26: #{tpu_custom_call.1} parent=23 // pred_check_branch
          %159 = sbr.rel (%p157) target = $region28
        $region27: #{tpu_custom_call.1} parent=23 // pred_region
          %s160 = sand.u32 %s28, 1
          %s161 = scalar_lea.sflag [#allocation5], %s160
          %s162 = sand.u32 %s28, 1
          %s163 = smul.addr %s162, 16
          %s164 = scalar_lea.vmem [#allocation4], %s163
          %s165 = smul.u32 2, %s18
          %s167 = ssub.s32 256, 256
          %168 = vsyncadd %s161, %s167
          %s169 = smul.addr %s165, 128
          %s170 = scalar_lea.hbm %s1, %s169
          %s171 = sshll.u32 %s164, 4
          %s172 = int_to_ptr.vmem [resolvable:$true] %s171
          %177 = dma.hbm_to_vmem [thread:$0]  %s170, 256, %s172, %s161, 128, 128, 8
        $region28: #{tpu_custom_call.1} parent=23 // pred_fallthru
          _
      $region24: #{tpu_custom_call.1} parent=5 // pred_fallthru
        _
      %p178 = scmp.le.s32.totalorder 1, %s18
      %p179 = scmp.lt.s32.totalorder %s18, 3
      %p180 = pnand %p178, %p179
      %p181 = pneg %p180
      // Predicated region
      $region29: #{tpu_custom_call.1} parent=5 // pred_check
        _
      $region30: #{tpu_custom_call.1} parent=5 // pred_check_branch
        %183 = sbr.rel (%p180) target = $region32
      $region31: #{tpu_custom_call.1} parent=5 // pred_region
        %s184 = ssub.s32 %s18, 1
        %s185 = sand.u32 %s31, 1
        %s186 = scalar_lea.sflag [#allocation5], %s185
        %s187 = sand.u32 %s31, 1
        %s188 = smul.addr %s187, 16
        %s189 = scalar_lea.vmem [#allocation4], %s188
        // Predicated region
        $region33: #{tpu_custom_call.1} parent=31 // pred_check
          %p190 = pneg %p44
        $region34: #{tpu_custom_call.1} parent=31 // pred_check_branch
          %192 = sbr.rel (%p190) target = $region36
        $region35: #{tpu_custom_call.1} parent=31 // pred_region
          %193 = dma.done %s186, 256
        $region36: #{tpu_custom_call.1} parent=31 // pred_fallthru
          _
        // Predicated region
        $region37: #{tpu_custom_call.1} parent=31 // pred_check
          %p194 = pneg %p65
        $region38: #{tpu_custom_call.1} parent=31 // pred_check_branch
          %196 = sbr.rel (%p194) target = $region40
        $region39: #{tpu_custom_call.1} parent=31 // pred_region
          %197 = dma.done [#allocation7], 1024
        $region40: #{tpu_custom_call.1} parent=31 // pred_fallthru
          _
        // Predicated region
        $region41: #{tpu_custom_call.1} parent=31 // pred_check
          %p198 = pneg %p86
        $region42: #{tpu_custom_call.1} parent=31 // pred_check_branch
          %200 = sbr.rel (%p198) target = $region44
        $region43: #{tpu_custom_call.1} parent=31 // pred_region
          %201 = dma.done [#allocation7], 256
        $region44: #{tpu_custom_call.1} parent=31 // pred_fallthru
          _
        %s202 = sand.u32 %s31, 1
        %s203 = scalar_lea.sflag [#allocation5], %s202
        %s204 = sand.u32 %s31, 1
        %s205 = smul.addr %s204, 16
        %s206 = scalar_lea.vmem [#allocation4], %s205
        %p207 = pneg %p44
        %p208 = pneg %p41
        %p209 = pneg %p65
        %p210 = pneg %p62
        %p211 = pneg %p86
        %p212 = pneg %p83
        %p213 = pneg %p112
        %p214 = pneg %p109
        %p215 = scmp.lt.s32.totalorder %s23, 1
        %s216 = scalar_select %p215, %s23, 1
        %s217 = smul.addr %s216, 2
        %s218 = smul.addr %s217, 8
        %s219 = scalar_lea.vmem %s4, %s218
        %s220 = smul.u32 2, %s23
        %p221 = scmp.lt.s32.totalorder %s23, 1
        %s222 = scalar_select %p221, %s23, 1
        %s223 = smul.addr %s222, 2
        %s224 = smul.addr %s223, 8
        %s225 = scalar_lea.vmem %s4, %s224
        %v226 = vld [vmem:[%s189] sm:$0xff]
        %v227 = vld [vmem:[%s189 + $0x8] sm:$0xff]
        %v228 = vld [vmem:[#allocation6] sm:$0xff]
        %v229 = vld [vmem:[#allocation6 + $0x8] sm:$0xff]
        %v230 = vld [vmem:[#allocation6 + $0x10] sm:$0xff]
        %v231 = vld [vmem:[#allocation6 + $0x18] sm:$0xff]
        %v232 = vld [vmem:[#allocation6 + $0x20] sm:$0xff]
        %v233 = vld [vmem:[#allocation6 + $0x28] sm:$0xff]
        %v234 = vld [vmem:[#allocation6 + $0x30] sm:$0xff]
        %v235 = vld [vmem:[#allocation6 + $0x38] sm:$0xff]
        %vm236 = vcmask 523264
        %v238 = vsel %vm236, %v226, 0
        %v241 = vsel %vm236, %v227, 0
        %243 = vmatprep.subr.mxu0 0.0
        %244 = vmatpush1.msra.mxu0 0.0
        %245 = vmatprep.subr.mxu0 0.0
        %246 = vmatpush1.msra.mxu0 0.0
        %247 = vmatprep.subr.mxu0 0.0
        %248 = vmatpush1.msra.mxu0 0.0
        %249 = vmatprep.subr.mxu0 0.0
        %250 = vmatpush1.msra.mxu0 0.0
        %251 = vmatprep.subr.mxu0 0.0
        %252 = vmatpush1.msra.mxu0 0.0
        %253 = vmatprep.subr.mxu0 0.0
        %254 = vmatpush1.msra.mxu0 0.0
        %255 = vmatprep.subr.mxu0 0.0
        %256 = vmatpush1.msra.mxu0 0.0
        %257 = vmatprep.subr.mxu0 0.0
        %258 = vmatpush1.msra.mxu0 0.0
        %259 = vmatprep.subr.mxu0 0.0
        %260 = vmatpush1.msra.mxu0 %v235
        %261 = vmatprep.subr.mxu0 0.0
        %262 = vmatpush1.msra.mxu0 %v234
        %263 = vmatprep.subr.mxu0 0.0
        %264 = vmatpush1.msra.mxu0 %v233
        %265 = vmatprep.subr.mxu0 0.0
        %266 = vmatpush1.msra.mxu0 %v232
        %267 = vmatprep.subr.mxu0 0.0
        %268 = vmatpush1.msra.mxu0 %v231
        %269 = vmatprep.subr.mxu0 0.0
        %270 = vmatpush1.msra.mxu0 %v230
        %271 = vmatprep.subr.mxu0 0.0
        %272 = vmatpush1.msra.mxu0 %v229
        %273 = vmatprep.subr.mxu0 0.0
        %274 = vmatpush1.msra.mxu0 %v228
        %275 = vmatprep.subr.mxu0 0.0
        %276 = vmatpush2.msra.mxu0 0.0
        %277 = vmatprep.subr.mxu0 0.0
        %278 = vmatpush2.msra.mxu0 0.0
        %279 = vmatprep.subr.mxu0 0.0
        %280 = vmatpush2.msra.mxu0 0.0
        %281 = vmatprep.subr.mxu0 0.0
        %282 = vmatpush2.msra.mxu0 0.0
        %283 = vmatprep.subr.mxu0 0.0
        %284 = vmatpush2.msra.mxu0 0.0
        %285 = vmatprep.subr.mxu0 0.0
        %286 = vmatpush2.msra.mxu0 0.0
        %287 = vmatprep.subr.mxu0 0.0
        %288 = vmatpush2.msra.mxu0 0.0
        %289 = vmatprep.subr.mxu0 0.0
        %290 = vmatpush2.msra.mxu0 0.0
        %291 = vmatprep.subr.mxu0 0.0
        %292 = vmatpush2.msra.mxu0 0.0
        %293 = vmatprep.subr.mxu0 0.0
        %294 = vmatpush2.msra.mxu0 0.0
        %295 = vmatprep.subr.mxu0 0.0
        %296 = vmatpush2.msra.mxu0 0.0
        %297 = vmatprep.subr.mxu0 0.0
        %298 = vmatpush2.msra.mxu0 0.0
        %299 = vmatprep.subr.mxu0 0.0
        %300 = vmatpush2.msra.mxu0 0.0
        %301 = vmatprep.subr.mxu0 0.0
        %302 = vmatpush2.msra.mxu0 0.0
        %303 = vmatprep.subr.mxu0 0.0
        %304 = vmatpush2.msra.mxu0 0.0
        %305 = vmatprep.subr.mxu0 0.0
        %306 = vmatpush2.msra.mxu0 0.0
        %307 = vmatprep.mubr.f32.mxu0 0.0
        %308 = vmatmul.mubr.f32.gmra.mxu0 %v238
        %v309 = vpop.f32.mrf.mxu0
        %v310 = vadd.f32 0.0, %v309
        %v311 = vpop.f32.mrf.mxu0
        %312 = vmatprep.mubr.f32.mxu0 0.0
        %313 = vmatmul.mubr.f32.gmra.mxu0 %v241
        %v314 = vpop.f32.mrf.mxu0
        %v315 = vadd.f32 0.0, %v314
        %v316 = vpop.f32.mrf.mxu0
        %317 = vdwg.mxu0
        %v318 = vmul.f32 %v310, %v310
        %v319 = vmul.f32 %v315, %v315
        %v320 = vld [vmem:[#allocation8] sm:$0xff]
        %v321 = vld [vmem:[#allocation8 + $0x8] sm:$0xff]
        %vm322 = vcmask 539648
        %v324 = vsel %vm322, %v320, 0
        %v327 = vsel %vm322, %v321, 0
        %v330 = vsel %vm322, %v318, 0
        %v333 = vsel %vm322, %v319, 0
        %335 = vmatprep.subr.mxu0 0.0
        %336 = vmatpush1.xpose.msra.mxu0 0.0
        %337 = vmatprep.subr.mxu0 0.0
        %338 = vmatpush1.xpose.msra.mxu0 0.0
        %339 = vmatprep.subr.mxu0 0.0
        %340 = vmatpush1.xpose.msra.mxu0 0.0
        %341 = vmatprep.subr.mxu0 0.0
        %342 = vmatpush1.xpose.msra.mxu0 0.0
        %343 = vmatprep.subr.mxu0 0.0
        %344 = vmatpush1.xpose.msra.mxu0 0.0
        %345 = vmatprep.subr.mxu0 0.0
        %346 = vmatpush1.xpose.msra.mxu0 0.0
        %347 = vmatprep.subr.mxu0 0.0
        %348 = vmatpush1.xpose.msra.mxu0 0.0
        %349 = vmatprep.subr.mxu0 0.0
        %350 = vmatpush1.xpose.msra.mxu0 0.0
        %351 = vmatprep.subr.mxu0 0.0
        %352 = vmatpush1.xpose.msra.mxu0 0.0
        %353 = vmatprep.subr.mxu0 0.0
        %354 = vmatpush1.xpose.msra.mxu0 0.0
        %355 = vmatprep.subr.mxu0 0.0
        %356 = vmatpush1.xpose.msra.mxu0 0.0
        %357 = vmatprep.subr.mxu0 0.0
        %358 = vmatpush1.xpose.msra.mxu0 0.0
        %359 = vmatprep.subr.mxu0 0.0
        %360 = vmatpush1.xpose.msra.mxu0 0.0
        %361 = vmatprep.subr.mxu0 0.0
        %362 = vmatpush1.xpose.msra.mxu0 0.0
        %363 = vmatprep.subr.mxu0 0.0
        %364 = vmatpush1.xpose.msra.mxu0 %v333
        %365 = vmatprep.subr.mxu0 0.0
        %366 = vmatpush1.xpose.msra.mxu0 %v330
        %367 = vmatprep.subr.mxu0 0.0
        %368 = vmatpush2.xpose.msra.mxu0 0.0
        %369 = vmatprep.subr.mxu0 0.0
        %370 = vmatpush2.xpose.msra.mxu0 0.0
        %371 = vmatprep.subr.mxu0 0.0
        %372 = vmatpush2.xpose.msra.mxu0 0.0
        %373 = vmatprep.subr.mxu0 0.0
        %374 = vmatpush2.xpose.msra.mxu0 0.0
        %375 = vmatprep.subr.mxu0 0.0
        %376 = vmatpush2.xpose.msra.mxu0 0.0
        %377 = vmatprep.subr.mxu0 0.0
        %378 = vmatpush2.xpose.msra.mxu0 0.0
        %379 = vmatprep.subr.mxu0 0.0
        %380 = vmatpush2.xpose.msra.mxu0 0.0
        %381 = vmatprep.subr.mxu0 0.0
        %382 = vmatpush2.xpose.msra.mxu0 0.0
        %383 = vmatprep.subr.mxu0 0.0
        %384 = vmatpush2.xpose.msra.mxu0 0.0
        %385 = vmatprep.subr.mxu0 0.0
        %386 = vmatpush2.xpose.msra.mxu0 0.0
        %387 = vmatprep.subr.mxu0 0.0
        %388 = vmatpush2.xpose.msra.mxu0 0.0
        %389 = vmatprep.subr.mxu0 0.0
        %390 = vmatpush2.xpose.msra.mxu0 0.0
        %391 = vmatprep.subr.mxu0 0.0
        %392 = vmatpush2.xpose.msra.mxu0 0.0
        %393 = vmatprep.subr.mxu0 0.0
        %394 = vmatpush2.xpose.msra.mxu0 0.0
        %395 = vmatprep.subr.mxu0 0.0
        %396 = vmatpush2.xpose.msra.mxu0 0.0
        %397 = vmatprep.subr.mxu0 0.0
        %398 = vmatpush2.xpose.msra.mxu0 0.0
        %399 = vmatprep.mubr.f32.mxu0 0.0
        %400 = vmatmul.mubr.f32.gmra.mxu0 %v324
        %v401 = vpop.f32.mrf.mxu0
        %v402 = vadd.f32 0.0, %v401
        %v403 = vpop.f32.mrf.mxu0
        %404 = vmatprep.mubr.f32.mxu0 0.0
        %405 = vmatmul.mubr.f32.gmra.mxu0 %v327
        %v406 = vpop.f32.mrf.mxu0
        %v407 = vadd.f32 0.0, %v406
        %v408 = vpop.f32.mrf.mxu0
        %409 = vdwg.mxu0
        %s410 = sld [smem:[#allocation3 + %s23]]
        %v411 = vstv %s410
        %v412 = vmul.f32 %v402, %v411
        %v413 = vmul.f32 %v407, %v411
        %v414 = vmax.f32 %v412, 1e-10
        %v415 = vmax.f32 %v413, 1e-10
        %v416 = vlog2.pop %v414
        %v417 = vmul.f32 %v416, 0.6931472
        %v418 = vlog2.pop %v415
        %v419 = vmul.f32 %v418, 0.6931472
        %v420 = vmul.f32 %v417, 4.3429446
        %v421 = vmul.f32 %v419, 4.3429446
        %v422 = vlaneseq
        %v423 = vand.u32 %v422, 127
        %vm424 = vcmp.lt.s32.totalorder %v423, 9
        %v425 = vsel %vm424, %v420, -inf
        %v426 = vsel %vm424, %v421, -inf
        %vm427 = vcmask 130048
        %v428 = vsel %vm427, %v425, -inf
        %v429 = vsel %vm427, %v426, -inf
        %v430 = vmax.f32 %v428, %v429
        %431 = vmax.xlane.f32.xlu0 %v430
        %v432 = vpop.xlane.xlu0 %431
        %v433 = vrot.slane %v432, 4
        %v434 = vmax.f32 %v432, %v433
        %v435 = vrot.slane %v434, 2
        %v436 = vmax.f32 %v434, %v435
        %v437 = vrot.slane %v436, 1
        %v438 = vmax.f32 %v436, %v437
        %s439 = vtos %v438
        %s440 = ssub.f32 %s439, 80.0
        %v441 = vstv %s440
        %v442 = vmax.f32 %v420, %v441
        %v443 = vmax.f32 %v421, %v441
        %v444 = vsub.f32 %v442, -20.0
        %v445 = vsub.f32 %v443, -20.0
        %v446 = vmul.f32 %v444, 0.05
        %v447 = vmul.f32 %v445, 0.05
        %vm448 = vcmask 72704
        %449 = vst.msk [vmem:[%s225] sm:$0xff] %vm448, %v446
        %450 = vst.msk [vmem:[%s225 + $0x8] sm:$0xff] %vm448, %v447
        %p451 = scmp.lt.s32.totalorder %s23, 1
        %s452 = scalar_select %p451, %s23, 1
        %s453 = smul.addr %s452, 2
        %s454 = smul.addr %s453, 8
        %s455 = scalar_lea.vmem %s4, %s454
        // Predicated region
        $region45: #{tpu_custom_call.1} parent=31 // pred_check
          %p456 = pneg %p109
        $region46: #{tpu_custom_call.1} parent=31 // pred_check_branch
          %458 = sbr.rel (%p456) target = $region48
        $region47: #{tpu_custom_call.1} parent=31 // pred_region
          _
        $region48: #{tpu_custom_call.1} parent=31 // pred_fallthru
          _
      $region32: #{tpu_custom_call.1} parent=5 // pred_fallthru
        _
      %p459 = scmp.le.s32.totalorder 2, %s18
      // Predicated region
      $region49: #{tpu_custom_call.1} parent=5 // pred_check
        %p460 = pneg %p459
      $region50: #{tpu_custom_call.1} parent=5 // pred_check_branch
        %462 = sbr.rel (%p460) target = $region52
      $region51: #{tpu_custom_call.1} parent=5 // pred_region
        %s463 = ssub.s32 %s18, 2
        // Predicated region
        $region53: #{tpu_custom_call.1} parent=51 // pred_check
          %p464 = pneg %p115
        $region54: #{tpu_custom_call.1} parent=51 // pred_check_branch
          %466 = sbr.rel (%p464) target = $region56
        $region55: #{tpu_custom_call.1} parent=51 // pred_region
          %p467 = scmp.lt.s32.totalorder %s24, 1
          %s468 = scalar_select %p467, %s24, 1
          %s469 = smul.addr %s468, 2
          %s470 = smul.addr %s469, 8
          %s471 = scalar_lea.vmem %s4, %s470
        $region56: #{tpu_custom_call.1} parent=51 // pred_fallthru
          _
      $region52: #{tpu_custom_call.1} parent=5 // pred_fallthru
        _
    $region6: #{tpu_custom_call.1} parent=1 // loop_footer
      %s22 = sadd.s32 1, %s18
    $region7: #{tpu_custom_call.1} parent=1 // loop_footer_branch
      %17 = sbr.rel target = $region3
    $region8: #{tpu_custom_call.1} parent=1 // loop_exit
      _
    %472 = vsyncpa [#allocation5], 1
    %s473 = scalar_lea.sflag [#allocation5], 1
    %474 = vsyncpa %s473, 1
    %475 = vsyncpa [#allocation7], 1

</llo_original>
